<compile_context>
chip_gen: v7x
topology: tpu7x:2x2x1
jax: 0.10.0
libtpu: 0.0.40
codegen_flags: <defaults>
</compile_context>

<pallas_src>
import functools

import jax
import jax.numpy as jnp
from jax.experimental import pallas as pl
from jax.experimental.pallas import tpu as pltpu

D_IN, D_H1, D_H2, D_OUT = 290, 200, 100, 52


def mlp_kernel(x_ref, w1_ref, b1_ref, w2_ref, b2_ref, w3_ref, b3_ref, o_ref):
    # Matmul operands in bf16 (MXU-native), accumulate / bias-add / ReLU in f32 (VPU).
    x = x_ref[...].astype(jnp.bfloat16)  # no-op if the caller already feeds bf16

    # Layer 1: Linear(290, 200) + ReLU
    h1 = jnp.dot(x, w1_ref[...], preferred_element_type=jnp.float32)
    h1 = jnp.maximum(h1 + b1_ref[...], 0.0)

    # Layer 2: Linear(200, 100) + ReLU
    h2 = jnp.dot(h1.astype(jnp.bfloat16), w2_ref[...], preferred_element_type=jnp.float32)
    h2 = jnp.maximum(h2 + b2_ref[...], 0.0)

    # Layer "4": Linear(100, 52) + ReLU  (52-wide store; masked vst but minimal HBM traffic)
    h3 = jnp.dot(h2.astype(jnp.bfloat16), w3_ref[...], preferred_element_type=jnp.float32)
    h3 = jnp.maximum(h3 + b3_ref[...], 0.0)

    o_ref[...] = h3.astype(o_ref.dtype)


def _round_up(n, m):
    return ((n + m - 1) // m) * m


def _pick_tb(B, max_tb):
    """Static batch-tile selection (Python ints only; creates a few compile buckets)."""
    max_tb = max(8, _round_up(max_tb, 8))
    if B <= max_tb:
        # Small-batch path: right-size a single tile instead of DMA/compute on 256+ rows.
        return max(8, _round_up(B, 8))
    # Large batch: balance tiles so the last one isn't tiny and n_tiles >= 2
    # (v7x megacore sharding along the "parallel" grid axis needs >= 2 tiles).
    n_tiles = pl.cdiv(B, max_tb)
    return max(8, _round_up(pl.cdiv(B, n_tiles), 8))


@functools.partial(jax.jit, static_argnames=("tb",))
def _mlp_forward_impl(x, w1, b1, w2, b2, w3, b3, *, tb):
    B = x.shape[0]
    n_tiles = pl.cdiv(B, tb)

    # Advisory cost estimate (kept truthful: bf16 weights, unpadded x, 52-wide f32 output).
    flops = 2 * B * (D_IN * D_H1 + D_H1 * D_H2 + D_H2 * D_OUT)
    bytes_accessed = (
        B * D_IN * x.dtype.itemsize                          # x in
        + (D_IN * D_H1 + D_H1 * D_H2 + D_H2 * D_OUT) * 2     # bf16 weights
        + (D_H1 + D_H2 + D_OUT) * 4                          # f32 biases
        + B * D_OUT * 4                                      # f32 out
    )

    resident = lambda shape: pl.BlockSpec(shape, lambda i: (0, 0))  # DMA'd once, stays in VMEM

    return pl.pallas_call(
        mlp_kernel,
        out_shape=jax.ShapeDtypeStruct((B, D_OUT), jnp.float32),
        grid=(n_tiles,),
        in_specs=[
            # Ragged final tile is handled by Pallas partial-block masking on writeback;
            # rows are independent so garbage OOB input rows never reach valid outputs.
            pl.BlockSpec((tb, D_IN), lambda i: (i, 0)),      # x batch tile
            resident((D_IN, D_H1)), resident((1, D_H1)),     # w1, b1
            resident((D_H1, D_H2)), resident((1, D_H2)),     # w2, b2
            resident((D_H2, D_OUT)), resident((1, D_OUT)),   # w3, b3
        ],
        out_specs=pl.BlockSpec((tb, D_OUT), lambda i: (i, 0)),
        compiler_params=pltpu.CompilerParams(
            dimension_semantics=("parallel",),        # batch tiles shard across TCs (v7x)
            vmem_limit_bytes=32 * 1024 * 1024,        # raise v5e's 16 MiB default for big tiles
        ),
        cost_estimate=pl.CostEstimate(
            flops=flops, transcendentals=0, bytes_accessed=bytes_accessed
        ),
    )(x, w1, b1, w2, b2, w3, b3)


def mlp_forward(x, w1, b1, w2, b2, w3, b3, *, max_tb=1024):
    """x: (B, 290) f32 or bf16.  Weights (in, out) bf16/f32; biases (1, out) f32.
    Returns (B, 52) f32."""
    tb = _pick_tb(x.shape[0], max_tb)
    return _mlp_forward_impl(x, w1, b1, w2, b2, w3, b3, tb=tb)


def prepare_params(w1, b1, w2, b2, w3, b3):
    """One-time param prep (hoisted out of the per-call forward): bf16 weights, f32 biases."""
    return (
        w1.astype(jnp.bfloat16), b1.astype(jnp.float32),
        w2.astype(jnp.bfloat16), b2.astype(jnp.float32),
        w3.astype(jnp.bfloat16), b3.astype(jnp.float32),
    )


def init_params(key):
    # Deterministic synthetic init (PyTorch-style uniform(-1/sqrt(fan_in), 1/sqrt(fan_in))),
    # stored as (in_features, out_features) — i.e. already transposed vs. torch nn.Linear.
    ks = jax.random.split(key, 6)

    def lin(kw, kb, fan_in, fan_out):
        bound = 1.0 / jnp.sqrt(fan_in)
        w = jax.random.uniform(kw, (fan_in, fan_out), jnp.float32, -bound, bound)
        b = jax.random.uniform(kb, (1, fan_out), jnp.float32, -bound, bound)
        return w, b

    w1, b1 = lin(ks[0], ks[1], D_IN, D_H1)
    w2, b2 = lin(ks[2], ks[3], D_H1, D_H2)
    w3, b3 = lin(ks[4], ks[5], D_H2, D_OUT)
    return w1, b1, w2, b2, w3, b3


def _ref_forward_bf16(x, w1, b1, w2, b2, w3, b3):
    # Same bf16-operand / f32-accumulate math as the kernel.
    def layer(h, w, b):
        y = jnp.dot(h.astype(jnp.bfloat16), w.astype(jnp.bfloat16),
                    preferred_element_type=jnp.float32)
        return jnp.maximum(y + b, 0.0)
    return layer(layer(layer(x, w1, b1), w2, b2), w3, b3)


def _ref_forward_f32(x, w1, b1, w2, b2, w3, b3):
    h = jnp.maximum(x @ w1 + b1, 0.0)
    h = jnp.maximum(h @ w2 + b2, 0.0)
    return jnp.maximum(h @ w3 + b3, 0.0)


if __name__ == "__main__":
    key = jax.random.PRNGKey(0)
    kx, kx2, kp = jax.random.split(key, 3)

    raw = init_params(kp)
    params = prepare_params(*raw)  # one-time bf16 weight prep (outside the jitted forward)
    w1, b1, w2, b2, w3, b3 = raw

    # Small-batch path (single right-sized tile).
    B = 8
    x = jax.random.normal(kx, (B, D_IN), jnp.float32)
    out = jax.block_until_ready(mlp_forward(x, *params))
    assert out.shape == (B, D_OUT)
    assert jnp.allclose(out, _ref_forward_bf16(x, w1, b1, w2, b2, w3, b3),
                        atol=1e-2, rtol=1e-2)
    assert jnp.allclose(out, _ref_forward_f32(x, w1, b1, w2, b2, w3, b3),
                        atol=6e-2, rtol=6e-2)

    # Multi-tile path with a ragged final tile (exercises partial-block writeback masking).
    B2 = 300
    x2 = jax.random.normal(kx2, (B2, D_IN), jnp.float32)
    out2 = jax.block_until_ready(mlp_forward(x2, *params, max_tb=128))
    assert out2.shape == (B2, D_OUT)
    assert jnp.allclose(out2, _ref_forward_bf16(x2, w1, b1, w2, b2, w3, b3),
                        atol=1e-2, rtol=1e-2)

    print("KERNEL_OK")
</pallas_src>

<mosaic_0001>
module attributes {stable_mosaic.version = 11 : i64} {
  func.func @mlp_kernel(%arg0: i32, %arg1: memref<8x290xf32, #tpu.memory_space<vmem>>, %arg2: memref<290x200xbf16, #tpu.memory_space<vmem>>, %arg3: memref<1x200xf32, #tpu.memory_space<vmem>>, %arg4: memref<200x100xbf16, #tpu.memory_space<vmem>>, %arg5: memref<1x100xf32, #tpu.memory_space<vmem>>, %arg6: memref<100x52xbf16, #tpu.memory_space<vmem>>, %arg7: memref<1x52xf32, #tpu.memory_space<vmem>>, %arg8: memref<8x52xf32, #tpu.memory_space<vmem>>) attributes {dimension_semantics = [#tpu.dimension_semantics<parallel>], iteration_bounds = array<i64: 1>, scalar_prefetch = 0 : i64, scratch_operands = 0 : i64, tpu.core_type = #tpu.core_type<tc>, window_params = [{transform_indices = @transform_0, window_bounds = array<i64: 8, 290>}, {pipeline_mode = #tpu.pipeline_mode<synchronous>, transform_indices = @transform_1, window_bounds = array<i64: 290, 200>}, {pipeline_mode = #tpu.pipeline_mode<synchronous>, transform_indices = @transform_2, window_bounds = array<i64: 1, 200>}, {pipeline_mode = #tpu.pipeline_mode<synchronous>, transform_indices = @transform_3, window_bounds = array<i64: 200, 100>}, {pipeline_mode = #tpu.pipeline_mode<synchronous>, transform_indices = @transform_4, window_bounds = array<i64: 1, 100>}, {pipeline_mode = #tpu.pipeline_mode<synchronous>, transform_indices = @transform_5, window_bounds = array<i64: 100, 52>}, {pipeline_mode = #tpu.pipeline_mode<synchronous>, transform_indices = @transform_6, window_bounds = array<i64: 1, 52>}, {transform_indices = @transform_7, window_bounds = array<i64: 8, 52>}]} {
    %c0 = arith.constant 0 : index
    %c0_0 = arith.constant 0 : index
    %0 = vector.load %arg1[%c0, %c0_0] : memref<8x290xf32, #tpu.memory_space<vmem>>, vector<8x290xf32>
    %1 = arith.truncf %0 : vector<8x290xf32> to vector<8x290xbf16>
    %c0_1 = arith.constant 0 : index
    %c0_2 = arith.constant 0 : index
    %2 = vector.load %arg2[%c0_1, %c0_2] : memref<290x200xbf16, #tpu.memory_space<vmem>>, vector<290x200xbf16>
    %cst = arith.constant dense<0.000000e+00> : vector<8x200xf32>
    %3 = tpu.matmul %1, %2, %cst {dimension_numbers = #tpu.dot_dimension_numbers<[1], [0], [0], [1], [0, 0, 1, 1], [], []>} : vector<8x290xbf16>, vector<290x200xbf16>, vector<8x200xf32> -> vector<8x200xf32>
    %c0_3 = arith.constant 0 : index
    %c0_4 = arith.constant 0 : index
    %4 = vector.load %arg3[%c0_3, %c0_4] : memref<1x200xf32, #tpu.memory_space<vmem>>, vector<1x200xf32>
    %5 = vector.broadcast %4 : vector<1x200xf32> to vector<8x200xf32>
    %6 = arith.addf %3, %5 : vector<8x200xf32>
    %cst_5 = arith.constant 0.000000e+00 : f32
    %7 = vector.broadcast %cst_5 : f32 to vector<8x200xf32>
    %8 = arith.maximumf %6, %7 : vector<8x200xf32>
    %9 = arith.truncf %8 : vector<8x200xf32> to vector<8x200xbf16>
    %c0_6 = arith.constant 0 : index
    %c0_7 = arith.constant 0 : index
    %10 = vector.load %arg4[%c0_6, %c0_7] : memref<200x100xbf16, #tpu.memory_space<vmem>>, vector<200x100xbf16>
    %cst_8 = arith.constant dense<0.000000e+00> : vector<8x100xf32>
    %11 = tpu.matmul %9, %10, %cst_8 {dimension_numbers = #tpu.dot_dimension_numbers<[1], [0], [0], [1], [0, 0, 1, 1], [], []>} : vector<8x200xbf16>, vector<200x100xbf16>, vector<8x100xf32> -> vector<8x100xf32>
    %c0_9 = arith.constant 0 : index
    %c0_10 = arith.constant 0 : index
    %12 = vector.load %arg5[%c0_9, %c0_10] : memref<1x100xf32, #tpu.memory_space<vmem>>, vector<1x100xf32>
    %13 = vector.broadcast %12 : vector<1x100xf32> to vector<8x100xf32>
    %14 = arith.addf %11, %13 : vector<8x100xf32>
    %cst_11 = arith.constant 0.000000e+00 : f32
    %15 = vector.broadcast %cst_11 : f32 to vector<8x100xf32>
    %16 = arith.maximumf %14, %15 : vector<8x100xf32>
    %17 = arith.truncf %16 : vector<8x100xf32> to vector<8x100xbf16>
    %c0_12 = arith.constant 0 : index
    %c0_13 = arith.constant 0 : index
    %18 = vector.load %arg6[%c0_12, %c0_13] : memref<100x52xbf16, #tpu.memory_space<vmem>>, vector<100x52xbf16>
    %cst_14 = arith.constant dense<0.000000e+00> : vector<8x52xf32>
    %19 = tpu.matmul %17, %18, %cst_14 {dimension_numbers = #tpu.dot_dimension_numbers<[1], [0], [0], [1], [0, 0, 1, 1], [], []>} : vector<8x100xbf16>, vector<100x52xbf16>, vector<8x52xf32> -> vector<8x52xf32>
    %c0_15 = arith.constant 0 : index
    %c0_16 = arith.constant 0 : index
    %20 = vector.load %arg7[%c0_15, %c0_16] : memref<1x52xf32, #tpu.memory_space<vmem>>, vector<1x52xf32>
    %21 = vector.broadcast %20 : vector<1x52xf32> to vector<8x52xf32>
    %22 = arith.addf %19, %21 : vector<8x52xf32>
    %cst_17 = arith.constant 0.000000e+00 : f32
    %23 = vector.broadcast %cst_17 : f32 to vector<8x52xf32>
    %24 = arith.maximumf %22, %23 : vector<8x52xf32>
    %c0_18 = arith.constant 0 : index
    %c0_19 = arith.constant 0 : index
    %25 = vector.load %arg8[%c0_18, %c0_19] : memref<8x52xf32, #tpu.memory_space<vmem>>, vector<8x52xf32>
    tpu.vector_store %arg8[%c0_18, %c0_19], %24 {strides = array<i32>} : memref<8x52xf32, #tpu.memory_space<vmem>>, vector<8x52xf32>,
    return
  }
  func.func @transform_0(%arg0: i32) -> (i32, i32) {
    %c0_i32 = arith.constant 0 : i32
    %c0_i32_0 = arith.constant 0 : i32
    return %arg0, %c0_i32 : i32, i32
  }
  func.func @transform_1(%arg0: i32) -> (i32, i32) {
    %c0_i32 = arith.constant 0 : i32
    %c0_i32_0 = arith.constant 0 : i32
    %c0_i32_1 = arith.constant 0 : i32
    return %c0_i32, %c0_i32_0 : i32, i32
  }
  func.func @transform_2(%arg0: i32) -> (i32, i32) {
    %c0_i32 = arith.constant 0 : i32
    %c0_i32_0 = arith.constant 0 : i32
    %c0_i32_1 = arith.constant 0 : i32
    return %c0_i32, %c0_i32_0 : i32, i32
  }
  func.func @transform_3(%arg0: i32) -> (i32, i32) {
    %c0_i32 = arith.constant 0 : i32
    %c0_i32_0 = arith.constant 0 : i32
    %c0_i32_1 = arith.constant 0 : i32
    return %c0_i32, %c0_i32_0 : i32, i32
  }
  func.func @transform_4(%arg0: i32) -> (i32, i32) {
    %c0_i32 = arith.constant 0 : i32
    %c0_i32_0 = arith.constant 0 : i32
    %c0_i32_1 = arith.constant 0 : i32
    return %c0_i32, %c0_i32_0 : i32, i32
  }
  func.func @transform_5(%arg0: i32) -> (i32, i32) {
    %c0_i32 = arith.constant 0 : i32
    %c0_i32_0 = arith.constant 0 : i32
    %c0_i32_1 = arith.constant 0 : i32
    return %c0_i32, %c0_i32_0 : i32, i32
  }
  func.func @transform_6(%arg0: i32) -> (i32, i32) {
    %c0_i32 = arith.constant 0 : i32
    %c0_i32_0 = arith.constant 0 : i32
    %c0_i32_1 = arith.constant 0 : i32
    return %c0_i32, %c0_i32_0 : i32, i32
  }
  func.func @transform_7(%arg0: i32) -> (i32, i32) {
    %c0_i32 = arith.constant 0 : i32
    %c0_i32_0 = arith.constant 0 : i32
    return %arg0, %c0_i32 : i32, i32
  }
}

</mosaic_0001>

<llo_original>
// kernel: _mlp_forward_impl.1
$region0: #{_mlp_forward_impl.1}
  #allocation0 [shape = 'u32[]', space=smem, size = 0x4, offset = 0x4, fixed_abs, tag = 'smem constant byte address 0x4 - core index']
  #allocation1 [shape = 'u32[144,128]{1,0:T(1,128)}', space=vmem, size = 0x12000, scoped, tag = 'internal scratch']
  %s0 = inlined_call_operand.vmem [shape: f32[8,290], index: 0, kind: input, shape index: {}]
  %s1 = inlined_call_operand.hbm [shape: bf16[290,200], index: 1, kind: input, shape index: {}]
  %s2 = inlined_call_operand.vmem [shape: f32[1,200], index: 2, kind: input, shape index: {}]
  %s3 = inlined_call_operand.hbm [shape: bf16[200,100], index: 3, kind: input, shape index: {}]
  %s4 = inlined_call_operand.vmem [shape: f32[1,100], index: 4, kind: input, shape index: {}]
  %s5 = inlined_call_operand.vmem [shape: bf16[100,52], index: 5, kind: input, shape index: {}]
  %s6 = inlined_call_operand.vmem [shape: f32[1,52], index: 6, kind: input, shape index: {}]
  %s7 = inlined_call_operand.hbm [shape: f32[8,52], index: 7, kind: output, shape index: {}]
  %s8 = sld [smem:[#allocation0]]
  $region46: #{_mlp_forward_impl.1} parent=0
    _
  %s10 = ssub.s32 1, %s8
  %s11 = scalar_select 0, %s10, %s8
  $region1: #{_mlp_forward_impl.1} parent=0
    #allocation2 [shape = 'u8[151552]{0}', space=vmem, size = 0x25000, scoped, tag = 'input window, operand 1, single buffered']
    #allocation3 [shape = 's32[1]{0}', space=sflag, size = 0x4, scoped, tag = 'scoped memory for _mlp_forward_impl.1']
    #allocation4 [shape = 's32[1]{0}', space=sflag, size = 0x4, scoped, tag = 'scoped memory for _mlp_forward_impl.1']
    #allocation5 [shape = 'u8[51200]{0}', space=vmem, size = 0xc800, scoped, tag = 'input window, operand 3, single buffered']
    #allocation6 [shape = 's32[1]{0}', space=sflag, size = 0x4, scoped, tag = 'scoped memory for _mlp_forward_impl.1']
    #allocation7 [shape = 'u8[4096]{0}', space=vmem, size = 0x1000, scoped, tag = 'output window, operand 0, single buffered']
    %12 = vsyncpa [#allocation3], 0
    %13 = vsyncpa [#allocation6], 0
    %14 = vsyncpa [#allocation4], 0
    // Predicated region
    $region2: #{_mlp_forward_impl.1} parent=1 // pred_check
      _
    $region3: #{_mlp_forward_impl.1} parent=1 // pred_check_branch
      %16 = sbr.rel (0) target = $region5
    $region4: #{_mlp_forward_impl.1} parent=1 // pred_region
      _
    $region5: #{_mlp_forward_impl.1} parent=1 // pred_fallthru
      _
    // Predicated region
    $region6: #{_mlp_forward_impl.1} parent=1 // pred_check
      _
    $region7: #{_mlp_forward_impl.1} parent=1 // pred_check_branch
      %18 = sbr.rel (0) target = $region9
    $region8: #{_mlp_forward_impl.1} parent=1 // pred_region
      %s20 = ssub.s32 4736, 4736
      %21 = vsyncadd [#allocation3], %s20
      %s22 = sshll.u32 [#allocation2], 4
      %s23 = int_to_ptr.vmem [resolvable:$true] %s22
      %28 = dma.hbm_to_vmem [thread:$0]  %s1, 4736, %s23, [#allocation3], 128, 128, 8
    $region9: #{_mlp_forward_impl.1} parent=1 // pred_fallthru
      _
    // Predicated region
    $region10: #{_mlp_forward_impl.1} parent=1 // pred_check
      _
    $region11: #{_mlp_forward_impl.1} parent=1 // pred_check_branch
      %30 = sbr.rel (0) target = $region13
    $region12: #{_mlp_forward_impl.1} parent=1 // pred_region
      _
    $region13: #{_mlp_forward_impl.1} parent=1 // pred_fallthru
      _
    // Predicated region
    $region14: #{_mlp_forward_impl.1} parent=1 // pred_check
      _
    $region15: #{_mlp_forward_impl.1} parent=1 // pred_check_branch
      %32 = sbr.rel (0) target = $region17
    $region16: #{_mlp_forward_impl.1} parent=1 // pred_region
      %s34 = ssub.s32 1600, 1600
      %35 = vsyncadd [#allocation6], %s34
      %s36 = sshll.u32 [#allocation5], 4
      %s37 = int_to_ptr.vmem [resolvable:$true] %s36
      %42 = dma.hbm_to_vmem [thread:$0]  %s3, 1600, %s37, [#allocation6], 64, 64, 4
    $region17: #{_mlp_forward_impl.1} parent=1 // pred_fallthru
      _
    // Predicated region
    $region18: #{_mlp_forward_impl.1} parent=1 // pred_check
      _
    $region19: #{_mlp_forward_impl.1} parent=1 // pred_check_branch
      %44 = sbr.rel (0) target = $region21
    $region20: #{_mlp_forward_impl.1} parent=1 // pred_region
      _
    $region21: #{_mlp_forward_impl.1} parent=1 // pred_fallthru
      _
    // Predicated region
    $region22: #{_mlp_forward_impl.1} parent=1 // pred_check
      _
    $region23: #{_mlp_forward_impl.1} parent=1 // pred_check_branch
      %46 = sbr.rel (0) target = $region25
    $region24: #{_mlp_forward_impl.1} parent=1 // pred_region
      _
    $region25: #{_mlp_forward_impl.1} parent=1 // pred_fallthru
      _
    // Predicated region
    $region26: #{_mlp_forward_impl.1} parent=1 // pred_check
      _
    $region27: #{_mlp_forward_impl.1} parent=1 // pred_check_branch
      %48 = sbr.rel (0) target = $region29
    $region28: #{_mlp_forward_impl.1} parent=1 // pred_region
      _
    $region29: #{_mlp_forward_impl.1} parent=1 // pred_fallthru
      _
    // Predicated region
    $region30: #{_mlp_forward_impl.1} parent=1 // pred_check
      _
    $region31: #{_mlp_forward_impl.1} parent=1 // pred_check_branch
      %50 = sbr.rel (0) target = $region33
    $region32: #{_mlp_forward_impl.1} parent=1 // pred_region
      %51 = dma.done [#allocation3], 4736
    $region33: #{_mlp_forward_impl.1} parent=1 // pred_fallthru
      _
    // Predicated region
    $region34: #{_mlp_forward_impl.1} parent=1 // pred_check
      _
    $region35: #{_mlp_forward_impl.1} parent=1 // pred_check_branch
      %53 = sbr.rel (0) target = $region37
    $region36: #{_mlp_forward_impl.1} parent=1 // pred_region
      %54 = dma.done [#allocation6], 1600
    $region37: #{_mlp_forward_impl.1} parent=1 // pred_fallthru
      _
    %v56 = vld [vmem:[%s0] sm:$0xff]
    %v57 = vld [vmem:[%s0 + $0x8] sm:$0xff]
    %v58 = vld [vmem:[%s0 + $0x10] sm:$0xff]
    %v59 = vpack.c.bf16 %v56, %v56
    %v60 = vpack.c.bf16 %v57, %v57
    %v61 = vpack.c.bf16 %v58, %v58
    %v62 = vld [vmem:[#allocation2] sm:$0xff]
    %v63 = vld [vmem:[#allocation2 + $0x8] sm:$0xff]
    %v64 = vld [vmem:[#allocation2 + $0x10] sm:$0xff]
    %v65 = vld [vmem:[#allocation2 + $0x18] sm:$0xff]
    %v66 = vld [vmem:[#allocation2 + $0x20] sm:$0xff]
    %v67 = vld [vmem:[#allocation2 + $0x28] sm:$0xff]
    %v68 = vld [vmem:[#allocation2 + $0x30] sm:$0xff]
    %v69 = vld [vmem:[#allocation2 + $0x38] sm:$0xff]
    %v70 = vld [vmem:[#allocation2 + $0x40] sm:$0xff]
    %v71 = vld [vmem:[#allocation2 + $0x48] sm:$0xff]
    %v72 = vld [vmem:[#allocation2 + $0x50] sm:$0xff]
    %v73 = vld [vmem:[#allocation2 + $0x58] sm:$0xff]
    %v74 = vld [vmem:[#allocation2 + $0x60] sm:$0xff]
    %v75 = vld [vmem:[#allocation2 + $0x68] sm:$0xff]
    %v76 = vld [vmem:[#allocation2 + $0x70] sm:$0xff]
    %v77 = vld [vmem:[#allocation2 + $0x78] sm:$0xff]
    %v78 = vld [vmem:[#allocation2 + $0x80] sm:$0xff]
    %v79 = vld [vmem:[#allocation2 + $0x88] sm:$0xff]
    %v80 = vld [vmem:[#allocation2 + $0x90] sm:$0xff]
    %v81 = vld [vmem:[#allocation2 + $0x98] sm:$0xff]
    %v82 = vld [vmem:[#allocation2 + $0xa0] sm:$0xff]
    %v83 = vld [vmem:[#allocation2 + $0xa8] sm:$0xff]
    %v84 = vld [vmem:[#allocation2 + $0xb0] sm:$0xff]
    %v85 = vld [vmem:[#allocation2 + $0xb8] sm:$0xff]
    %v86 = vld [vmem:[#allocation2 + $0xc0] sm:$0xff]
    %v87 = vld [vmem:[#allocation2 + $0xc8] sm:$0xff]
    %v88 = vld [vmem:[#allocation2 + $0xd0] sm:$0xff]
    %v89 = vld [vmem:[#allocation2 + $0xd8] sm:$0xff]
    %v90 = vld [vmem:[#allocation2 + $0xe0] sm:$0xff]
    %v91 = vld [vmem:[#allocation2 + $0xe8] sm:$0xff]
    %v92 = vld [vmem:[#allocation2 + $0xf0] sm:$0xff]
    %v93 = vld [vmem:[#allocation2 + $0xf8] sm:$0xff]
    %v94 = vld [vmem:[#allocation2 + $0x100] sm:$0xff]
    %v95 = vld [vmem:[#allocation2 + $0x108] sm:$0xff]
    %v96 = vld [vmem:[#allocation2 + $0x110] sm:$0xff]
    %v97 = vld [vmem:[#allocation2 + $0x118] sm:$0xff]
    %v98 = vld [vmem:[#allocation2 + $0x120] sm:$0x11]
    %v99 = vld [vmem:[%s2] sm:$0x3]
    %v101 = vlaneseq
    %v102 = vshrl.u32 %v101, 7
    %v103 = vsub.s32 0, %v102
    %v104 = vrot.slane %v99, %v103
    %v105 = vlaneseq
    %v106 = vshrl.u32 %v105, 7
    %v107 = vsub.s32 1, %v106
    %v108 = vrot.slane %v99, %v107
    %v148 = vunpack.c.l.b16 %v62
    %v149 = vunpack.c.h.b16 %v62
    %v150 = vunpack.c.l.b16 %v63
    %v151 = vunpack.c.h.b16 %v63
    %v152 = vunpack.c.l.b16 %v64
    %v153 = vunpack.c.h.b16 %v64
    %v154 = vunpack.c.l.b16 %v65
    %v155 = vunpack.c.h.b16 %v65
    %v156 = vunpack.c.l.b16 %v66
    %v157 = vunpack.c.h.b16 %v66
    %v158 = vunpack.c.l.b16 %v67
    %v159 = vunpack.c.h.b16 %v67
    %v160 = vunpack.c.l.b16 %v68
    %v161 = vunpack.c.h.b16 %v68
    %v162 = vunpack.c.l.b16 %v69
    %v163 = vunpack.c.h.b16 %v69
    %v164 = vunpack.c.l.b16 %v70
    %v165 = vunpack.c.h.b16 %v70
    %v166 = vunpack.c.l.b16 %v71
    %v167 = vunpack.c.h.b16 %v71
    %v168 = vunpack.c.l.b16 %v72
    %v169 = vunpack.c.h.b16 %v72
    %v170 = vunpack.c.l.b16 %v73
    %v171 = vunpack.c.h.b16 %v73
    %v172 = vunpack.c.l.b16 %v74
    %v173 = vunpack.c.h.b16 %v74
    %v174 = vunpack.c.l.b16 %v75
    %v175 = vunpack.c.h.b16 %v75
    %v176 = vunpack.c.l.b16 %v76
    %v177 = vunpack.c.h.b16 %v76
    %v178 = vunpack.c.l.b16 %v77
    %v179 = vunpack.c.h.b16 %v77
    %v180 = vunpack.c.l.b16 %v78
    %v181 = vunpack.c.h.b16 %v78
    %v182 = vunpack.c.l.b16 %v79
    %v183 = vunpack.c.h.b16 %v79
    %v184 = vunpack.c.l.b16 %v80
    %v185 = vunpack.c.h.b16 %v80
    %v186 = vunpack.c.l.b16 %v81
    %v187 = vunpack.c.h.b16 %v81
    %v188 = vunpack.c.l.b16 %v82
    %v189 = vunpack.c.h.b16 %v82
    %v190 = vunpack.c.l.b16 %v83
    %v191 = vunpack.c.h.b16 %v83
    %v192 = vunpack.c.l.b16 %v84
    %v193 = vunpack.c.h.b16 %v84
    %v194 = vunpack.c.l.b16 %v85
    %v195 = vunpack.c.h.b16 %v85
    %v196 = vunpack.c.l.b16 %v86
    %v197 = vunpack.c.h.b16 %v86
    %v198 = vunpack.c.l.b16 %v87
    %v199 = vunpack.c.h.b16 %v87
    %v200 = vunpack.c.l.b16 %v88
    %v201 = vunpack.c.h.b16 %v88
    %v202 = vunpack.c.l.b16 %v89
    %v203 = vunpack.c.h.b16 %v89
    %v204 = vunpack.c.l.b16 %v90
    %v205 = vunpack.c.h.b16 %v90
    %v206 = vunpack.c.l.b16 %v91
    %v207 = vunpack.c.h.b16 %v91
    %v208 = vunpack.c.l.b16 %v92
    %v209 = vunpack.c.h.b16 %v92
    %v210 = vunpack.c.l.b16 %v93
    %v211 = vunpack.c.h.b16 %v93
    %v212 = vunpack.c.l.b16 %v94
    %v213 = vunpack.c.h.b16 %v94
    %v214 = vunpack.c.l.b16 %v95
    %v215 = vunpack.c.h.b16 %v95
    %v216 = vunpack.c.l.b16 %v96
    %v217 = vunpack.c.h.b16 %v96
    %v218 = vunpack.c.l.b16 %v97
    %v219 = vunpack.c.h.b16 %v97
    %v220 = vunpack.c.l.b16 %v98
    %v221 = vunpack.c.h.b16 %v98
    %v222 = vpack.c.b16 %v150, %v148
    %v223 = vpack.c.b16 %v151, %v149
    %v224 = vpack.c.b16 %v154, %v152
    %v225 = vpack.c.b16 %v155, %v153
    %v226 = vpack.c.b16 %v158, %v156
    %v227 = vpack.c.b16 %v159, %v157
    %v228 = vpack.c.b16 %v162, %v160
    %v229 = vpack.c.b16 %v163, %v161
    %v230 = vpack.c.b16 %v166, %v164
    %v231 = vpack.c.b16 %v167, %v165
    %v232 = vpack.c.b16 %v170, %v168
    %v233 = vpack.c.b16 %v171, %v169
    %v234 = vpack.c.b16 %v174, %v172
    %v235 = vpack.c.b16 %v175, %v173
    %v236 = vpack.c.b16 %v178, %v176
    %v237 = vpack.c.b16 %v179, %v177
    %v238 = vpack.c.b16 %v182, %v180
    %v239 = vpack.c.b16 %v183, %v181
    %v240 = vpack.c.b16 %v186, %v184
    %v241 = vpack.c.b16 %v187, %v185
    %v242 = vpack.c.b16 %v190, %v188
    %v243 = vpack.c.b16 %v191, %v189
    %v244 = vpack.c.b16 %v194, %v192
    %v245 = vpack.c.b16 %v195, %v193
    %v246 = vpack.c.b16 %v198, %v196
    %v247 = vpack.c.b16 %v199, %v197
    %v248 = vpack.c.b16 %v202, %v200
    %v249 = vpack.c.b16 %v203, %v201
    %v250 = vpack.c.b16 %v206, %v204
    %v251 = vpack.c.b16 %v207, %v205
    %v252 = vpack.c.b16 %v210, %v208
    %v253 = vpack.c.b16 %v211, %v209
    %v254 = vpack.c.b16 %v214, %v212
    %v255 = vpack.c.b16 %v215, %v213
    %v256 = vpack.c.b16 %v218, %v216
    %v257 = vpack.c.b16 %v219, %v217
    %v258 = vpack.c.b16 %v220, %v220
    %v259 = vpack.c.b16 %v221, %v221
    %vm296 = vcmask 277504
    %v298 = vsel %vm296, %v61, 0
    %vm300 = vcmask 1040384
    %v302 = vsel %vm300, %v258, 0
    %v305 = vsel %vm300, %v259, 0
    %307 = vmatprep.subr.bf16.mxu0 %v223
    %308 = vmatpush1.bf16.msra.mxu0 %v222
    %309 = vmatprep.subr.bf16.mxu0 %v225
    %310 = vmatpush1.bf16.msra.mxu0 %v224
    %311 = vmatprep.subr.bf16.mxu0 %v227
    %312 = vmatpush1.bf16.msra.mxu0 %v226
    %313 = vmatprep.subr.bf16.mxu0 %v229
    %314 = vmatpush1.bf16.msra.mxu0 %v228
    %315 = vmatprep.subr.bf16.mxu0 %v231
    %316 = vmatpush1.bf16.msra.mxu0 %v230
    %317 = vmatprep.subr.bf16.mxu0 %v233
    %318 = vmatpush1.bf16.msra.mxu0 %v232
    %319 = vmatprep.subr.bf16.mxu0 %v235
    %320 = vmatpush1.bf16.msra.mxu0 %v234
    %321 = vmatprep.subr.bf16.mxu0 %v237
    %322 = vmatpush1.bf16.msra.mxu0 %v236
    %323 = vmatprep.subr.bf16.mxu0 %v239
    %324 = vmatpush1.bf16.msra.mxu0 %v238
    %325 = vmatprep.subr.bf16.mxu0 %v241
    %326 = vmatpush1.bf16.msra.mxu0 %v240
    %327 = vmatprep.subr.bf16.mxu0 %v243
    %328 = vmatpush1.bf16.msra.mxu0 %v242
    %329 = vmatprep.subr.bf16.mxu0 %v245
    %330 = vmatpush1.bf16.msra.mxu0 %v244
    %331 = vmatprep.subr.bf16.mxu0 %v247
    %332 = vmatpush1.bf16.msra.mxu0 %v246
    %333 = vmatprep.subr.bf16.mxu0 %v249
    %334 = vmatpush1.bf16.msra.mxu0 %v248
    %335 = vmatprep.subr.bf16.mxu0 %v251
    %336 = vmatpush1.bf16.msra.mxu0 %v250
    %337 = vmatprep.subr.bf16.mxu0 %v253
    %338 = vmatpush1.bf16.msra.mxu0 %v252
    %339 = vmatprep.mubr.bf16.mxu0 %v60
    %340 = vmatmul.mubr.bf16.gmra.mrb[0].mxu0 %v59
    %v341 = vpop.f32.mrb[0].mxu0
    %v342 = vadd.f32 %v104, %v341
    %v343 = vpop.f32.mrb[0].mxu0
    %v344 = vadd.f32 %v108, %v343
    %v345 = vpop.f32.mrb[0].mxu0
    %v346 = vpop.f32.mrb[0].mxu0
    %347 = vdwg.mxu0
    %348 = vmatprep.subr.bf16.mxu0 %v255
    %349 = vmatpush1.bf16.msra.mxu0 %v254
    %350 = vmatprep.subr.bf16.mxu0 %v257
    %351 = vmatpush1.bf16.msra.mxu0 %v256
    %352 = vmatprep.subr.bf16.mxu0 %v305
    %353 = vmatpush1.bf16.msra.mxu0 %v302
    %354 = vmatprep.subr.bf16.mxu0 0
    %355 = vmatpush1.bf16.msra.mxu0 0
    %356 = vmatprep.subr.bf16.mxu0 0
    %357 = vmatpush1.bf16.msra.mxu0 0
    %358 = vmatprep.subr.bf16.mxu0 0
    %359 = vmatpush1.bf16.msra.mxu0 0
    %360 = vmatprep.subr.bf16.mxu0 0
    %361 = vmatpush1.bf16.msra.mxu0 0
    %362 = vmatprep.subr.bf16.mxu0 0
    %363 = vmatpush1.bf16.msra.mxu0 0
    %364 = vmatprep.subr.bf16.mxu0 0
    %365 = vmatpush1.bf16.msra.mxu0 0
    %366 = vmatprep.subr.bf16.mxu0 0
    %367 = vmatpush1.bf16.msra.mxu0 0
    %368 = vmatprep.subr.bf16.mxu0 0
    %369 = vmatpush1.bf16.msra.mxu0 0
    %370 = vmatprep.subr.bf16.mxu0 0
    %371 = vmatpush1.bf16.msra.mxu0 0
    %372 = vmatprep.subr.bf16.mxu0 0
    %373 = vmatpush1.bf16.msra.mxu0 0
    %374 = vmatprep.subr.bf16.mxu0 0
    %375 = vmatpush1.bf16.msra.mxu0 0
    %376 = vmatprep.subr.bf16.mxu0 0
    %377 = vmatpush1.bf16.msra.mxu0 0
    %378 = vmatprep.subr.bf16.mxu0 0
    %379 = vmatpush1.bf16.msra.mxu0 0
    %380 = vmatprep.mubr.bf16.mxu0 0
    %381 = vmatmul.mubr.bf16.gmra.mrb[0].mxu0 %v298
    %v382 = vpop.f32.mrb[0].mxu0
    %v383 = vadd.f32 %v342, %v382
    %v384 = vpop.f32.mrb[0].mxu0
    %v385 = vadd.f32 %v344, %v384
    %v386 = vpop.f32.mrb[0].mxu0
    %v387 = vpop.f32.mrb[0].mxu0
    %388 = vdwg.mxu0
    %v389 = vmax.f32 %v383, 0.0
    %v390 = vmax.f32 %v385, 0.0
    %v391 = vpack.c.bf16 %v389, %v389
    %v392 = vpack.c.bf16 %v390, %v390
    %v393 = vld [vmem:[#allocation5] sm:$0xf]
    %v394 = vld [vmem:[#allocation5 + $0x4] sm:$0xf]
    %v395 = vld [vmem:[#allocation5 + $0x8] sm:$0xf]
    %v396 = vld [vmem:[#allocation5 + $0xc] sm:$0xf]
    %v397 = vld [vmem:[#allocation5 + $0x10] sm:$0xf]
    %v398 = vld [vmem:[#allocation5 + $0x14] sm:$0xf]
    %v399 = vld [vmem:[#allocation5 + $0x18] sm:$0xf]
    %v400 = vld [vmem:[#allocation5 + $0x1c] sm:$0xf]
    %v401 = vld [vmem:[#allocation5 + $0x20] sm:$0xf]
    %v402 = vld [vmem:[#allocation5 + $0x24] sm:$0xf]
    %v403 = vld [vmem:[#allocation5 + $0x28] sm:$0xf]
    %v404 = vld [vmem:[#allocation5 + $0x2c] sm:$0xf]
    %v405 = vld [vmem:[#allocation5 + $0x30] sm:$0xf]
    %v406 = vld [vmem:[#allocation5 + $0x34] sm:$0xf]
    %v407 = vld [vmem:[#allocation5 + $0x38] sm:$0xf]
    %v408 = vld [vmem:[#allocation5 + $0x3c] sm:$0xf]
    %v409 = vld [vmem:[#allocation5 + $0x40] sm:$0xf]
    %v410 = vld [vmem:[#allocation5 + $0x44] sm:$0xf]
    %v411 = vld [vmem:[#allocation5 + $0x48] sm:$0xf]
    %v412 = vld [vmem:[#allocation5 + $0x4c] sm:$0xf]
    %v413 = vld [vmem:[#allocation5 + $0x50] sm:$0xf]
    %v414 = vld [vmem:[#allocation5 + $0x54] sm:$0xf]
    %v415 = vld [vmem:[#allocation5 + $0x58] sm:$0xf]
    %v416 = vld [vmem:[#allocation5 + $0x5c] sm:$0xf]
    %v417 = vld [vmem:[#allocation5 + $0x60] sm:$0xf]
    %v418 = vld [vmem:[%s4] sm:$0x1]
    %v420 = vlaneseq
    %v421 = vshrl.u32 %v420, 7
    %v422 = vsub.s32 0, %v421
    %v423 = vrot.slane %v418, %v422
    %v450 = vunpack.c.l.b16 %v393
    %v451 = vunpack.c.l.b16 %v394
    %v452 = vunpack.c.l.b16 %v395
    %v453 = vunpack.c.l.b16 %v396
    %v454 = vunpack.c.l.b16 %v397
    %v455 = vunpack.c.l.b16 %v398
    %v456 = vunpack.c.l.b16 %v399
    %v457 = vunpack.c.l.b16 %v400
    %v458 = vunpack.c.l.b16 %v401
    %v459 = vunpack.c.l.b16 %v402
    %v460 = vunpack.c.l.b16 %v403
    %v461 = vunpack.c.l.b16 %v404
    %v462 = vunpack.c.l.b16 %v405
    %v463 = vunpack.c.l.b16 %v406
    %v464 = vunpack.c.l.b16 %v407
    %v465 = vunpack.c.l.b16 %v408
    %v466 = vunpack.c.l.b16 %v409
    %v467 = vunpack.c.l.b16 %v410
    %v468 = vunpack.c.l.b16 %v411
    %v469 = vunpack.c.l.b16 %v412
    %v470 = vunpack.c.l.b16 %v413
    %v471 = vunpack.c.l.b16 %v414
    %v472 = vunpack.c.l.b16 %v415
    %v473 = vunpack.c.l.b16 %v416
    %v474 = vunpack.c.l.b16 %v417
    %v475 = vpack.c.b16 %v451, %v450
    %v476 = vpack.c.b16 %v453, %v452
    %v477 = vpack.c.b16 %v455, %v454
    %v478 = vpack.c.b16 %v457, %v456
    %v479 = vpack.c.b16 %v459, %v458
    %v480 = vpack.c.b16 %v461, %v460
    %v481 = vpack.c.b16 %v463, %v462
    %v482 = vpack.c.b16 %v465, %v464
    %v483 = vpack.c.b16 %v467, %v466
    %v484 = vpack.c.b16 %v469, %v468
    %v485 = vpack.c.b16 %v471, %v470
    %v486 = vpack.c.b16 %v473, %v472
    %v487 = vpack.c.b16 %v474, %v474
    %vm500 = vcmask 588800
    %v502 = vsel %vm500, %v392, 0
    %vm504 = vcmask 1043456
    %v506 = vsel %vm504, %v487, 0
    %508 = vmatprep.subr.bf16.mxu0 0
    %509 = vmatpush1.bf16.msra.mxu0 %v475
    %510 = vmatprep.subr.bf16.mxu0 0
    %511 = vmatpush1.bf16.msra.mxu0 %v476
    %512 = vmatprep.subr.bf16.mxu0 0
    %513 = vmatpush1.bf16.msra.mxu0 %v477
    %514 = vmatprep.subr.bf16.mxu0 0
    %515 = vmatpush1.bf16.msra.mxu0 %v478
    %516 = vmatprep.subr.bf16.mxu0 0
    %517 = vmatpush1.bf16.msra.mxu0 %v479
    %518 = vmatprep.subr.bf16.mxu0 0
    %519 = vmatpush1.bf16.msra.mxu0 %v480
    %520 = vmatprep.subr.bf16.mxu0 0
    %521 = vmatpush1.bf16.msra.mxu0 %v481
    %522 = vmatprep.subr.bf16.mxu0 0
    %523 = vmatpush1.bf16.msra.mxu0 %v482
    %524 = vmatprep.subr.bf16.mxu0 0
    %525 = vmatpush1.bf16.msra.mxu0 %v483
    %526 = vmatprep.subr.bf16.mxu0 0
    %527 = vmatpush1.bf16.msra.mxu0 %v484
    %528 = vmatprep.subr.bf16.mxu0 0
    %529 = vmatpush1.bf16.msra.mxu0 %v485
    %530 = vmatprep.subr.bf16.mxu0 0
    %531 = vmatpush1.bf16.msra.mxu0 %v486
    %532 = vmatprep.subr.bf16.mxu0 0
    %533 = vmatpush1.bf16.msra.mxu0 %v506
    %534 = vmatprep.subr.bf16.mxu0 0
    %535 = vmatpush1.bf16.msra.mxu0 0
    %536 = vmatprep.subr.bf16.mxu0 0
    %537 = vmatpush1.bf16.msra.mxu0 0
    %538 = vmatprep.subr.bf16.mxu0 0
    %539 = vmatpush1.bf16.msra.mxu0 0
    %540 = vmatprep.mubr.bf16.mxu0 %v502
    %541 = vmatmul.mubr.bf16.gmra.mrb[0].mxu0 %v391
    %v542 = vpop.f32.mrb[0].mxu0
    %v543 = vadd.f32 %v423, %v542
    %v544 = vpop.f32.mrb[0].mxu0
    %v545 = vpop.f32.mrb[0].mxu0
    %v546 = vpop.f32.mrb[0].mxu0
    %547 = vdwg.mxu0
    %v548 = vmax.f32 %v543, 0.0
    %v549 = vpack.c.bf16 %v548, %v548
    %v550 = vld [vmem:[%s5] sm:$0xf]
    %v551 = vld [vmem:[%s5 + $0x4] sm:$0xf]
    %v552 = vld [vmem:[%s5 + $0x8] sm:$0xf]
    %v553 = vld [vmem:[%s5 + $0xc] sm:$0xf]
    %v554 = vld [vmem:[%s5 + $0x10] sm:$0xf]
    %v555 = vld [vmem:[%s5 + $0x14] sm:$0xf]
    %v556 = vld [vmem:[%s5 + $0x18] sm:$0xf]
    %v557 = vld [vmem:[%s5 + $0x1c] sm:$0xf]
    %v558 = vld [vmem:[%s5 + $0x20] sm:$0xf]
    %v559 = vld [vmem:[%s5 + $0x24] sm:$0xf]
    %v560 = vld [vmem:[%s5 + $0x28] sm:$0xf]
    %v561 = vld [vmem:[%s5 + $0x2c] sm:$0xf]
    %v562 = vld [vmem:[%s5 + $0x30] sm:$0x3]
    %v563 = vld [vmem:[%s6] sm:$0x1]
    %v565 = vlaneseq
    %v566 = vshrl.u32 %v565, 7
    %v567 = vsub.s32 0, %v566
    %v568 = vrot.slane %v563, %v567
    %v583 = vunpack.c.l.b16 %v550
    %v584 = vunpack.c.l.b16 %v551
    %v585 = vunpack.c.l.b16 %v552
    %v586 = vunpack.c.l.b16 %v553
    %v587 = vunpack.c.l.b16 %v554
    %v588 = vunpack.c.l.b16 %v555
    %v589 = vunpack.c.l.b16 %v556
    %v590 = vunpack.c.l.b16 %v557
    %v591 = vunpack.c.l.b16 %v558
    %v592 = vunpack.c.l.b16 %v559
    %v593 = vunpack.c.l.b16 %v560
    %v594 = vunpack.c.l.b16 %v561
    %v595 = vunpack.c.l.b16 %v562
    %v596 = vpack.c.b16 %v584, %v583
    %v597 = vpack.c.b16 %v586, %v585
    %v598 = vpack.c.b16 %v588, %v587
    %v599 = vpack.c.b16 %v590, %v589
    %v600 = vpack.c.b16 %v592, %v591
    %v601 = vpack.c.b16 %v594, %v593
    %v602 = vpack.c.b16 %v595, %v595
    %vm609 = vcmask 818176
    %v611 = vsel %vm609, %v549, 0
    %vm613 = vcmask 1041408
    %v615 = vsel %vm613, %v602, 0
    %617 = vmatprep.subr.bf16.mxu0 0
    %618 = vmatpush1.bf16.msra.mxu0 %v596
    %619 = vmatprep.subr.bf16.mxu0 0
    %620 = vmatpush1.bf16.msra.mxu0 %v597
    %621 = vmatprep.subr.bf16.mxu0 0
    %622 = vmatpush1.bf16.msra.mxu0 %v598
    %623 = vmatprep.subr.bf16.mxu0 0
    %624 = vmatpush1.bf16.msra.mxu0 %v599
    %625 = vmatprep.subr.bf16.mxu0 0
    %626 = vmatpush1.bf16.msra.mxu0 %v600
    %627 = vmatprep.subr.bf16.mxu0 0
    %628 = vmatpush1.bf16.msra.mxu0 %v601
    %629 = vmatprep.subr.bf16.mxu0 0
    %630 = vmatpush1.bf16.msra.mxu0 %v615
    %631 = vmatprep.subr.bf16.mxu0 0
    %632 = vmatpush1.bf16.msra.mxu0 0
    %633 = vmatprep.subr.bf16.mxu0 0
    %634 = vmatpush1.bf16.msra.mxu0 0
    %635 = vmatprep.subr.bf16.mxu0 0
    %636 = vmatpush1.bf16.msra.mxu0 0
    %637 = vmatprep.subr.bf16.mxu0 0
    %638 = vmatpush1.bf16.msra.mxu0 0
    %639 = vmatprep.subr.bf16.mxu0 0
    %640 = vmatpush1.bf16.msra.mxu0 0
    %641 = vmatprep.subr.bf16.mxu0 0
    %642 = vmatpush1.bf16.msra.mxu0 0
    %643 = vmatprep.subr.bf16.mxu0 0
    %644 = vmatpush1.bf16.msra.mxu0 0
    %645 = vmatprep.subr.bf16.mxu0 0
    %646 = vmatpush1.bf16.msra.mxu0 0
    %647 = vmatprep.subr.bf16.mxu0 0
    %648 = vmatpush1.bf16.msra.mxu0 0
    %649 = vmatprep.mubr.bf16.mxu0 0
    %650 = vmatmul.mubr.bf16.gmra.mrb[0].mxu0 %v611
    %v651 = vpop.f32.mrb[0].mxu0
    %v652 = vadd.f32 %v568, %v651
    %v653 = vpop.f32.mrb[0].mxu0
    %v654 = vpop.f32.mrb[0].mxu0
    %v655 = vpop.f32.mrb[0].mxu0
    %656 = vdwg.mxu0
    %v657 = vmax.f32 %v652, 0.0
    %vm658 = vcmask 424960
    %659 = vst.msk [vmem:[#allocation7] sm:$0xff] %vm658, %v657
    // Predicated region
    $region38: #{_mlp_forward_impl.1} parent=1 // pred_check
      _
    $region39: #{_mlp_forward_impl.1} parent=1 // pred_check_branch
      %661 = sbr.rel (0) target = $region41
    $region40: #{_mlp_forward_impl.1} parent=1 // pred_region
      %s663 = ssub.s32 128, 128
      %664 = vsyncadd [#allocation4], %s663
      %s666 = sshll.u32 [#allocation7], 4
      %s667 = int_to_ptr.vmem [resolvable:$true] %s666
      %669 = dma.vmem_to_hbm [thread:$0]  %s667, 128, %s7, [#allocation4]
    $region41: #{_mlp_forward_impl.1} parent=1 // pred_fallthru
      _
    // Predicated region
    $region42: #{_mlp_forward_impl.1} parent=1 // pred_check
      _
    $region43: #{_mlp_forward_impl.1} parent=1 // pred_check_branch
      %671 = sbr.rel (0) target = $region45
    $region44: #{_mlp_forward_impl.1} parent=1 // pred_region
      %672 = dma.done [#allocation4], 128
    $region45: #{_mlp_forward_impl.1} parent=1 // pred_fallthru
      _
    %673 = vsyncpa [#allocation3], 1
    %674 = vsyncpa [#allocation6], 1
    %675 = vsyncpa [#allocation4], 1

</llo_original>
